<compile_context>
chip_gen: v5e
topology: v5e:2x2
jax: 0.10.0
libtpu: 0.0.40
codegen_flags: <defaults>
</compile_context>

<pallas_src>
import math

import jax
import jax.numpy as jnp
from jax.experimental import pallas as pl
from jax.experimental.pallas import tpu as pltpu

_LANE = 128
_SUBLANE = 8


def _round_up(x, m):
    return (x + m - 1) // m * m


def _policy_kernel(state_ref,
                   w1_ref, b1_ref,
                   w2_ref, b2_ref,
                   w3_ref, b3_ref,
                   wm_ref, bm_ref,
                   scale_ref, bias_ref,
                   out_ref):
    wdt = w1_ref.dtype  # f32 or bf16; activations cast to match, acc in f32.

    x = state_ref[...].astype(wdt)
    h = jnp.dot(x, w1_ref[...], preferred_element_type=jnp.float32) + b1_ref[...]
    h = jnp.maximum(h, 0.0)

    h = jnp.dot(h.astype(wdt), w2_ref[...],
                preferred_element_type=jnp.float32) + b2_ref[...]
    h = jnp.maximum(h, 0.0)

    h = jnp.dot(h.astype(wdt), w3_ref[...],
                preferred_element_type=jnp.float32) + b3_ref[...]
    h = jnp.maximum(h, 0.0)

    m = jnp.dot(h.astype(wdt), wm_ref[...],
                preferred_element_type=jnp.float32) + bm_ref[...]
    out_ref[...] = (jnp.tanh(m) * scale_ref[...] + bias_ref[...]).astype(out_ref.dtype)


def _xavier_uniform(key, fan_in, fan_out, gain=1.0):
    # torch.nn.init.xavier_uniform_: U(-a, a), a = gain * sqrt(6 / (fan_in + fan_out))
    a = gain * math.sqrt(6.0 / (fan_in + fan_out))
    return jax.random.uniform(key, (fan_in, fan_out), jnp.float32, -a, a)


def init_deterministic_policy_params(key, num_inputs, num_actions, hidden_dim,
                                     action_space=None):
    """Weights stored as (in_features, out_features) == W.T of the torch layer."""
    k1, k2, k3, k4 = jax.random.split(key, 4)
    params = {
        "w1": _xavier_uniform(k1, num_inputs, hidden_dim),
        "b1": jnp.zeros((1, hidden_dim), jnp.float32),
        "w2": _xavier_uniform(k2, hidden_dim, hidden_dim),
        "b2": jnp.zeros((1, hidden_dim), jnp.float32),
        "w3": _xavier_uniform(k3, hidden_dim, hidden_dim),
        "b3": jnp.zeros((1, hidden_dim), jnp.float32),
        "wm": _xavier_uniform(k4, hidden_dim, num_actions),
        "bm": jnp.zeros((1, num_actions), jnp.float32),
    }
    if action_space is None:
        params["action_scale"] = jnp.ones((1, num_actions), jnp.float32)
        params["action_bias"] = jnp.zeros((1, num_actions), jnp.float32)
    else:
        high = jnp.asarray(action_space.high, jnp.float32).reshape(1, num_actions)
        low = jnp.asarray(action_space.low, jnp.float32).reshape(1, num_actions)
        params["action_scale"] = (high - low) / 2.0
        params["action_bias"] = (high + low) / 2.0
    return params


def prepare_policy_params(params, weight_dtype=jnp.float32):
    """One-time padding of input/hidden/action dims (input->8, hidden/action->128).

    Zero-padded weight rows/cols and zero biases are inert through the relu
    layers; padded output columns produce exactly 0 (tanh(0)*1 + 0) and are
    sliced off by the wrapper.

    weight_dtype=jnp.bfloat16 halves resident weight VMEM / HBM traffic (use
    for large hidden dims, esp. on v7x's 64 MiB-per-TC VMEM).
    """
    in_dim, hidden = params["w1"].shape
    num_actions = params["wm"].shape[1]
    in_pad = _round_up(in_dim, _SUBLANE)
    h_pad = _round_up(hidden, _LANE)
    a_pad = _round_up(num_actions, _LANE)

    def pad2(a, rows, cols, value=0.0, dtype=jnp.float32):
        a = jnp.pad(a, ((0, rows - a.shape[0]), (0, cols - a.shape[1])),
                    constant_values=value)
        return a.astype(dtype)

    prepared = {
        "w1": pad2(params["w1"], in_pad, h_pad, dtype=weight_dtype),
        "b1": pad2(params["b1"], 1, h_pad),
        "w2": pad2(params["w2"], h_pad, h_pad, dtype=weight_dtype),
        "b2": pad2(params["b2"], 1, h_pad),
        "w3": pad2(params["w3"], h_pad, h_pad, dtype=weight_dtype),
        "b3": pad2(params["b3"], 1, h_pad),
        "wm": pad2(params["wm"], h_pad, a_pad, dtype=weight_dtype),
        "bm": pad2(params["bm"], 1, a_pad),
        "scale": pad2(params["action_scale"], 1, a_pad, value=1.0),
        "bias": pad2(params["action_bias"], 1, a_pad, value=0.0),
    }
    # TODO(synk): for hidden_dim so large that even bf16 resident weights break
    # v7x's 64 MiB VMEM cap, stream w2/w3 in (h_tile, h_pad) slabs with
    # pltpu.emit_pipeline instead of keeping them fully resident.
    return prepared, num_actions


def _resident_spec(shape):
    """Constant-index-map, single-buffered BlockSpec for VMEM-resident params."""
    if hasattr(pl, "Buffered"):
        try:
            return pl.BlockSpec(shape, lambda i: (0, 0),
                                pipeline_mode=pl.Buffered(1)), 1
        except TypeError:
            pass
    return pl.BlockSpec(shape, lambda i: (0, 0)), 2


def deterministic_policy_forward(state, prepared, num_actions, *, batch_tile=512):
    """Run the DeterministicPolicy forward pass as one batch-tiled Pallas kernel.

    state: (B, num_inputs) float32
    prepared, num_actions: output of prepare_policy_params(params)
    """
    B, num_inputs = state.shape
    in_pad, h_pad = prepared["w1"].shape
    a_pad = prepared["wm"].shape[1]

    # Pad the state feature dim to match the padded w1 rows (zero cols x zero
    # rows -> inert).
    if in_pad != num_inputs:
        state = jnp.pad(state, ((0, 0), (0, in_pad - num_inputs)))

    # Batch tiling: split B evenly (minimal padding waste) and force >=2 grid
    # steps whenever B > 8 so v7x megacore sharding has work for both TCs.
    if B > _SUBLANE:
        n_steps = max(2, pl.cdiv(B, batch_tile))
    else:
        n_steps = 1
    tb = _round_up(pl.cdiv(B, n_steps), _SUBLANE)
    b_pad = _round_up(B, tb)
    if b_pad != B:
        state = jnp.pad(state, ((0, b_pad - B), (0, 0)))
    grid = (b_pad // tb,)

    weight_keys = ("w1", "b1", "w2", "b2", "w3", "b3", "wm", "bm", "scale", "bias")
    weight_arrays = [prepared[k] for k in weight_keys]

    in_specs = [pl.BlockSpec((tb, in_pad), lambda i: (i, 0))]
    weight_specs = []
    weight_buf_count = 2
    for a in weight_arrays:
        spec, weight_buf_count = _resident_spec(a.shape)
        weight_specs.append(spec)
    in_specs += weight_specs
    out_spec = pl.BlockSpec((tb, a_pad), lambda i: (i, 0))

    # Explicit VMEM budget: resident weights (x buffer count) + double-buffered
    # state/out tiles + ~3 live (tb, h_pad) f32 activation temporaries, +30%.
    weight_bytes = sum(int(a.size) * a.dtype.itemsize for a in weight_arrays)
    need = (weight_buf_count * weight_bytes
            + 2 * tb * in_pad * 4
            + 2 * tb * a_pad * 4
            + 3 * tb * h_pad * 4)
    vmem_limit = min(max(int(need * 1.3), 16 << 20), 112 << 20)

    flops = 2 * b_pad * (in_pad * h_pad + 2 * h_pad * h_pad + h_pad * a_pad)
    bytes_accessed = (4 * (state.size + b_pad * a_pad) + weight_bytes)
    cost = pl.CostEstimate(flops=flops,
                           transcendentals=b_pad * a_pad,
                           bytes_accessed=bytes_accessed)

    out = pl.pallas_call(
        _policy_kernel,
        out_shape=jax.ShapeDtypeStruct((b_pad, a_pad), jnp.float32),
        grid=grid,
        in_specs=in_specs,
        out_specs=out_spec,
        compiler_params=pltpu.CompilerParams(
            dimension_semantics=("parallel",),
            vmem_limit_bytes=vmem_limit),
        cost_estimate=cost,
    )(state, *weight_arrays)

    return out[:B, :num_actions]


def _reference_forward(state, params):
    # Pure-JAX fp32 reference (matches the torch module bit-for-bit semantics).
    hi = jax.lax.Precision.HIGHEST
    h = jax.nn.relu(jnp.dot(state, params["w1"], precision=hi) + params["b1"])
    h = jax.nn.relu(jnp.dot(h, params["w2"], precision=hi) + params["b2"])
    h = jax.nn.relu(jnp.dot(h, params["w3"], precision=hi) + params["b3"])
    m = jnp.tanh(jnp.dot(h, params["wm"], precision=hi) + params["bm"])
    return m * params["action_scale"] + params["action_bias"]


if __name__ == "__main__":
    key = jax.random.PRNGKey(0)
    k_params, k_state = jax.random.split(key)

    batch = 8
    num_inputs = 16
    num_actions = 4
    hidden_dim = 32

    params = init_deterministic_policy_params(k_params, num_inputs, num_actions, hidden_dim)
    state = jax.random.normal(k_state, (batch, num_inputs), jnp.float32)

    prepared, n_act = prepare_policy_params(params)
    out = deterministic_policy_forward(state, prepared, n_act)
    out = jax.block_until_ready(out)

    ref = _reference_forward(state, params)
    assert out.shape == (batch, num_actions)
    # Default MXU precision (bf16 passes, f32 accumulation) -> loosened tolerance
    # vs. the exact-fp32 reference; deliberate accuracy/perf trade per review.
    assert jnp.allclose(out, ref, atol=2e-2, rtol=2e-2), \
        f"max abs err {float(jnp.max(jnp.abs(out - ref)))}"

    # TODO(synk): DeterministicPolicy.sample()'s stateful torch noise draw
    # (self.noise.normal_(0, 0.1).clamp(-0.25, 0.25)) is left to the caller
    # (jax.random on host or pltpu.prng_* if it must live on-device).

    print("KERNEL_OK")
</pallas_src>

<mosaic_0001>
module attributes {stable_mosaic.version = 11 : i64} {
  func.func @_policy_kernel(%arg0: i32, %arg1: memref<8x16xf32, #tpu.memory_space<vmem>>, %arg2: memref<16x128xf32, #tpu.memory_space<vmem>>, %arg3: memref<1x128xf32, #tpu.memory_space<vmem>>, %arg4: memref<128x128xf32, #tpu.memory_space<vmem>>, %arg5: memref<1x128xf32, #tpu.memory_space<vmem>>, %arg6: memref<128x128xf32, #tpu.memory_space<vmem>>, %arg7: memref<1x128xf32, #tpu.memory_space<vmem>>, %arg8: memref<128x128xf32, #tpu.memory_space<vmem>>, %arg9: memref<1x128xf32, #tpu.memory_space<vmem>>, %arg10: memref<1x128xf32, #tpu.memory_space<vmem>>, %arg11: memref<1x128xf32, #tpu.memory_space<vmem>>, %arg12: memref<8x128xf32, #tpu.memory_space<vmem>>) attributes {dimension_semantics = [#tpu.dimension_semantics<parallel>], iteration_bounds = array<i64: 1>, scalar_prefetch = 0 : i64, scratch_operands = 0 : i64, tpu.core_type = #tpu.core_type<tc>, window_params = [{transform_indices = @transform_0, window_bounds = array<i64: 8, 16>}, {pipeline_mode = #tpu.pipeline_mode<synchronous>, transform_indices = @transform_1, window_bounds = array<i64: 16, 128>}, {pipeline_mode = #tpu.pipeline_mode<synchronous>, transform_indices = @transform_2, window_bounds = array<i64: 1, 128>}, {pipeline_mode = #tpu.pipeline_mode<synchronous>, transform_indices = @transform_3, window_bounds = array<i64: 128, 128>}, {pipeline_mode = #tpu.pipeline_mode<synchronous>, transform_indices = @transform_4, window_bounds = array<i64: 1, 128>}, {pipeline_mode = #tpu.pipeline_mode<synchronous>, transform_indices = @transform_5, window_bounds = array<i64: 128, 128>}, {pipeline_mode = #tpu.pipeline_mode<synchronous>, transform_indices = @transform_6, window_bounds = array<i64: 1, 128>}, {pipeline_mode = #tpu.pipeline_mode<synchronous>, transform_indices = @transform_7, window_bounds = array<i64: 128, 128>}, {pipeline_mode = #tpu.pipeline_mode<synchronous>, transform_indices = @transform_8, window_bounds = array<i64: 1, 128>}, {pipeline_mode = #tpu.pipeline_mode<synchronous>, transform_indices = @transform_9, window_bounds = array<i64: 1, 128>}, {pipeline_mode = #tpu.pipeline_mode<synchronous>, transform_indices = @transform_10, window_bounds = array<i64: 1, 128>}, {transform_indices = @transform_11, window_bounds = array<i64: 8, 128>}]} {
    %c0 = arith.constant 0 : index
    %c0_0 = arith.constant 0 : index
    %0 = vector.load %arg1[%c0, %c0_0] : memref<8x16xf32, #tpu.memory_space<vmem>>, vector<8x16xf32>
    %c0_1 = arith.constant 0 : index
    %c0_2 = arith.constant 0 : index
    %1 = vector.load %arg2[%c0_1, %c0_2] : memref<16x128xf32, #tpu.memory_space<vmem>>, vector<16x128xf32>
    %cst = arith.constant dense<0.000000e+00> : vector<8x128xf32>
    %2 = tpu.matmul %0, %1, %cst {dimension_numbers = #tpu.dot_dimension_numbers<[1], [0], [0], [1], [0, 0, 1, 1], [], []>} : vector<8x16xf32>, vector<16x128xf32>, vector<8x128xf32> -> vector<8x128xf32>
    %c0_3 = arith.constant 0 : index
    %c0_4 = arith.constant 0 : index
    %3 = vector.load %arg3[%c0_3, %c0_4] : memref<1x128xf32, #tpu.memory_space<vmem>>, vector<1x128xf32>
    %4 = vector.broadcast %3 : vector<1x128xf32> to vector<8x128xf32>
    %5 = arith.addf %2, %4 : vector<8x128xf32>
    %cst_5 = arith.constant 0.000000e+00 : f32
    %6 = vector.broadcast %cst_5 : f32 to vector<8x128xf32>
    %7 = arith.maximumf %5, %6 : vector<8x128xf32>
    %c0_6 = arith.constant 0 : index
    %c0_7 = arith.constant 0 : index
    %8 = vector.load %arg4[%c0_6, %c0_7] : memref<128x128xf32, #tpu.memory_space<vmem>>, vector<128x128xf32>
    %cst_8 = arith.constant dense<0.000000e+00> : vector<8x128xf32>
    %9 = tpu.matmul %7, %8, %cst_8 {dimension_numbers = #tpu.dot_dimension_numbers<[1], [0], [0], [1], [0, 0, 1, 1], [], []>} : vector<8x128xf32>, vector<128x128xf32>, vector<8x128xf32> -> vector<8x128xf32>
    %c0_9 = arith.constant 0 : index
    %c0_10 = arith.constant 0 : index
    %10 = vector.load %arg5[%c0_9, %c0_10] : memref<1x128xf32, #tpu.memory_space<vmem>>, vector<1x128xf32>
    %11 = vector.broadcast %10 : vector<1x128xf32> to vector<8x128xf32>
    %12 = arith.addf %9, %11 : vector<8x128xf32>
    %cst_11 = arith.constant 0.000000e+00 : f32
    %13 = vector.broadcast %cst_11 : f32 to vector<8x128xf32>
    %14 = arith.maximumf %12, %13 : vector<8x128xf32>
    %c0_12 = arith.constant 0 : index
    %c0_13 = arith.constant 0 : index
    %15 = vector.load %arg6[%c0_12, %c0_13] : memref<128x128xf32, #tpu.memory_space<vmem>>, vector<128x128xf32>
    %cst_14 = arith.constant dense<0.000000e+00> : vector<8x128xf32>
    %16 = tpu.matmul %14, %15, %cst_14 {dimension_numbers = #tpu.dot_dimension_numbers<[1], [0], [0], [1], [0, 0, 1, 1], [], []>} : vector<8x128xf32>, vector<128x128xf32>, vector<8x128xf32> -> vector<8x128xf32>
    %c0_15 = arith.constant 0 : index
    %c0_16 = arith.constant 0 : index
    %17 = vector.load %arg7[%c0_15, %c0_16] : memref<1x128xf32, #tpu.memory_space<vmem>>, vector<1x128xf32>
    %18 = vector.broadcast %17 : vector<1x128xf32> to vector<8x128xf32>
    %19 = arith.addf %16, %18 : vector<8x128xf32>
    %cst_17 = arith.constant 0.000000e+00 : f32
    %20 = vector.broadcast %cst_17 : f32 to vector<8x128xf32>
    %21 = arith.maximumf %19, %20 : vector<8x128xf32>
    %c0_18 = arith.constant 0 : index
    %c0_19 = arith.constant 0 : index
    %22 = vector.load %arg8[%c0_18, %c0_19] : memref<128x128xf32, #tpu.memory_space<vmem>>, vector<128x128xf32>
    %cst_20 = arith.constant dense<0.000000e+00> : vector<8x128xf32>
    %23 = tpu.matmul %21, %22, %cst_20 {dimension_numbers = #tpu.dot_dimension_numbers<[1], [0], [0], [1], [0, 0, 1, 1], [], []>} : vector<8x128xf32>, vector<128x128xf32>, vector<8x128xf32> -> vector<8x128xf32>
    %c0_21 = arith.constant 0 : index
    %c0_22 = arith.constant 0 : index
    %24 = vector.load %arg9[%c0_21, %c0_22] : memref<1x128xf32, #tpu.memory_space<vmem>>, vector<1x128xf32>
    %25 = vector.broadcast %24 : vector<1x128xf32> to vector<8x128xf32>
    %26 = arith.addf %23, %25 : vector<8x128xf32>
    %27 = math.tanh %26 : vector<8x128xf32>
    %c0_23 = arith.constant 0 : index
    %c0_24 = arith.constant 0 : index
    %28 = vector.load %arg10[%c0_23, %c0_24] : memref<1x128xf32, #tpu.memory_space<vmem>>, vector<1x128xf32>
    %29 = vector.broadcast %28 : vector<1x128xf32> to vector<8x128xf32>
    %30 = arith.mulf %27, %29 : vector<8x128xf32>
    %c0_25 = arith.constant 0 : index
    %c0_26 = arith.constant 0 : index
    %31 = vector.load %arg11[%c0_25, %c0_26] : memref<1x128xf32, #tpu.memory_space<vmem>>, vector<1x128xf32>
    %32 = vector.broadcast %31 : vector<1x128xf32> to vector<8x128xf32>
    %33 = arith.addf %30, %32 : vector<8x128xf32>
    %c0_27 = arith.constant 0 : index
    %c0_28 = arith.constant 0 : index
    %34 = vector.load %arg12[%c0_27, %c0_28] : memref<8x128xf32, #tpu.memory_space<vmem>>, vector<8x128xf32>
    tpu.vector_store %arg12[%c0_27, %c0_28], %33 {strides = array<i32>} : memref<8x128xf32, #tpu.memory_space<vmem>>, vector<8x128xf32>,
    return
  }
  func.func @transform_0(%arg0: i32) -> (i32, i32) {
    %c0_i32 = arith.constant 0 : i32
    %c0_i32_0 = arith.constant 0 : i32
    return %arg0, %c0_i32 : i32, i32
  }
  func.func @transform_1(%arg0: i32) -> (i32, i32) {
    %c0_i32 = arith.constant 0 : i32
    %c0_i32_0 = arith.constant 0 : i32
    %c0_i32_1 = arith.constant 0 : i32
    return %c0_i32, %c0_i32_0 : i32, i32
  }
  func.func @transform_2(%arg0: i32) -> (i32, i32) {
    %c0_i32 = arith.constant 0 : i32
    %c0_i32_0 = arith.constant 0 : i32
    %c0_i32_1 = arith.constant 0 : i32
    return %c0_i32, %c0_i32_0 : i32, i32
  }
  func.func @transform_3(%arg0: i32) -> (i32, i32) {
    %c0_i32 = arith.constant 0 : i32
    %c0_i32_0 = arith.constant 0 : i32
    %c0_i32_1 = arith.constant 0 : i32
    return %c0_i32, %c0_i32_0 : i32, i32
  }
  func.func @transform_4(%arg0: i32) -> (i32, i32) {
    %c0_i32 = arith.constant 0 : i32
    %c0_i32_0 = arith.constant 0 : i32
    %c0_i32_1 = arith.constant 0 : i32
    return %c0_i32, %c0_i32_0 : i32, i32
  }
  func.func @transform_5(%arg0: i32) -> (i32, i32) {
    %c0_i32 = arith.constant 0 : i32
    %c0_i32_0 = arith.constant 0 : i32
    %c0_i32_1 = arith.constant 0 : i32
    return %c0_i32, %c0_i32_0 : i32, i32
  }
  func.func @transform_6(%arg0: i32) -> (i32, i32) {
    %c0_i32 = arith.constant 0 : i32
    %c0_i32_0 = arith.constant 0 : i32
    %c0_i32_1 = arith.constant 0 : i32
    return %c0_i32, %c0_i32_0 : i32, i32
  }
  func.func @transform_7(%arg0: i32) -> (i32, i32) {
    %c0_i32 = arith.constant 0 : i32
    %c0_i32_0 = arith.constant 0 : i32
    %c0_i32_1 = arith.constant 0 : i32
    return %c0_i32, %c0_i32_0 : i32, i32
  }
  func.func @transform_8(%arg0: i32) -> (i32, i32) {
    %c0_i32 = arith.constant 0 : i32
    %c0_i32_0 = arith.constant 0 : i32
    %c0_i32_1 = arith.constant 0 : i32
    return %c0_i32, %c0_i32_0 : i32, i32
  }
  func.func @transform_9(%arg0: i32) -> (i32, i32) {
    %c0_i32 = arith.constant 0 : i32
    %c0_i32_0 = arith.constant 0 : i32
    %c0_i32_1 = arith.constant 0 : i32
    return %c0_i32, %c0_i32_0 : i32, i32
  }
  func.func @transform_10(%arg0: i32) -> (i32, i32) {
    %c0_i32 = arith.constant 0 : i32
    %c0_i32_0 = arith.constant 0 : i32
    %c0_i32_1 = arith.constant 0 : i32
    return %c0_i32, %c0_i32_0 : i32, i32
  }
  func.func @transform_11(%arg0: i32) -> (i32, i32) {
    %c0_i32 = arith.constant 0 : i32
    %c0_i32_0 = arith.constant 0 : i32
    return %arg0, %c0_i32 : i32, i32
  }
}

</mosaic_0001>

<llo_original>
// kernel: tpu_custom_call.1
$region0: #{tpu_custom_call.1}
  #allocation0 [shape = 'u32[]', space=smem, size = 0x4, offset = 0x4, fixed_abs, tag = 'smem constant byte address 0x4 - core index']
  #allocation1 [shape = 'u32[72,128]{1,0:T(1,128)}', space=vmem, size = 0x9000, scoped, tag = 'internal scratch']
  %s0 = inlined_call_operand.hbm [shape: f32[8,16], index: 0, kind: input, shape index: {}]
  %s1 = inlined_call_operand.hbm [shape: f32[16,128], index: 1, kind: input, shape index: {}]
  %s2 = inlined_call_operand.vmem [shape: f32[1,128], index: 2, kind: input, shape index: {}]
  %s3 = inlined_call_operand.hbm [shape: f32[128,128], index: 3, kind: input, shape index: {}]
  %s4 = inlined_call_operand.vmem [shape: f32[1,128], index: 4, kind: input, shape index: {}]
  %s5 = inlined_call_operand.hbm [shape: f32[128,128], index: 5, kind: input, shape index: {}]
  %s6 = inlined_call_operand.vmem [shape: f32[1,128], index: 6, kind: input, shape index: {}]
  %s7 = inlined_call_operand.hbm [shape: f32[128,128], index: 7, kind: input, shape index: {}]
  %s8 = inlined_call_operand.vmem [shape: f32[1,128], index: 8, kind: input, shape index: {}]
  %s9 = inlined_call_operand.vmem [shape: f32[1,128], index: 9, kind: input, shape index: {}]
  %s10 = inlined_call_operand.vmem [shape: f32[1,128], index: 10, kind: input, shape index: {}]
  %s11 = inlined_call_operand.hbm [shape: f32[8,128], index: 11, kind: output, shape index: {}]
  %s12 = sld [smem:[#allocation0]]
  $region74: #{tpu_custom_call.1} parent=0
    _
  %s14 = ssub.s32 1, %s12
  %s15 = scalar_select 0, %s14, %s12
  $region1: #{tpu_custom_call.1} parent=0
    #allocation2 [shape = 'u8[4096]{0}', space=vmem, size = 0x1000, scoped, tag = 'input window, operand 0, single buffered']
    #allocation3 [shape = 's32[1]{0}', space=sflag, size = 0x4, scoped, tag = 'scoped memory for tpu_custom_call.1']
    #allocation4 [shape = 's32[1]{0}', space=sflag, size = 0x4, scoped, tag = 'scoped memory for tpu_custom_call.1']
    #allocation5 [shape = 'u8[8192]{0}', space=vmem, size = 0x2000, scoped, tag = 'input window, operand 1, single buffered']
    #allocation6 [shape = 's32[1]{0}', space=sflag, size = 0x4, scoped, tag = 'scoped memory for tpu_custom_call.1']
    #allocation7 [shape = 'u8[65536]{0}', space=vmem, size = 0x10000, scoped, tag = 'input window, operand 3, single buffered']
    #allocation8 [shape = 'u8[65536]{0}', space=vmem, size = 0x10000, scoped, tag = 'input window, operand 5, single buffered']
    #allocation9 [shape = 's32[1]{0}', space=sflag, size = 0x4, scoped, tag = 'scoped memory for tpu_custom_call.1']
    #allocation10 [shape = 'u8[65536]{0}', space=vmem, size = 0x10000, scoped, tag = 'input window, operand 7, single buffered']
    #allocation11 [shape = 'u8[4096]{0}', space=vmem, size = 0x1000, scoped, tag = 'output window, operand 0, single buffered']
    %16 = vsyncpa [#allocation3], 0
    %17 = vsyncpa [#allocation6], 0
    %18 = vsyncpa [#allocation9], 0
    %19 = vsyncpa [#allocation4], 0
    // Predicated region
    $region2: #{tpu_custom_call.1} parent=1 // pred_check
      _
    $region3: #{tpu_custom_call.1} parent=1 // pred_check_branch
      %21 = sbr.rel (0) target = $region5
    $region4: #{tpu_custom_call.1} parent=1 // pred_region
      %23 = vsyncadd [#allocation3], 0
      %s25 = sshll.u32 %s0, 4
      %s26 = int_to_ptr.hbm [resolvable:$true] %s25
      %s27 = sshll.u32 [#allocation2], 4
      %s28 = int_to_ptr.vmem [resolvable:$true] %s27
      %30 = dma.hbm_to_vmem [thread:$0]  %s26, 128, %s28, [#allocation3]
    $region5: #{tpu_custom_call.1} parent=1 // pred_fallthru
      _
    // Predicated region
    $region6: #{tpu_custom_call.1} parent=1 // pred_check
      _
    $region7: #{tpu_custom_call.1} parent=1 // pred_check_branch
      %32 = sbr.rel (0) target = $region9
    $region8: #{tpu_custom_call.1} parent=1 // pred_region
      %34 = vsyncadd [#allocation6], 0
      %s35 = sshll.u32 %s1, 4
      %s36 = int_to_ptr.hbm [resolvable:$true] %s35
      %s37 = sshll.u32 [#allocation5], 4
      %s38 = int_to_ptr.vmem [resolvable:$true] %s37
      %43 = dma.hbm_to_vmem [thread:$0]  %s36, 256, %s38, [#allocation6], 128, 128, 8
    $region9: #{tpu_custom_call.1} parent=1 // pred_fallthru
      _
    // Predicated region
    $region10: #{tpu_custom_call.1} parent=1 // pred_check
      _
    $region11: #{tpu_custom_call.1} parent=1 // pred_check_branch
      %45 = sbr.rel (0) target = $region13
    $region12: #{tpu_custom_call.1} parent=1 // pred_region
      _
    $region13: #{tpu_custom_call.1} parent=1 // pred_fallthru
      _
    // Predicated region
    $region14: #{tpu_custom_call.1} parent=1 // pred_check
      _
    $region15: #{tpu_custom_call.1} parent=1 // pred_check_branch
      %47 = sbr.rel (0) target = $region17
    $region16: #{tpu_custom_call.1} parent=1 // pred_region
      %49 = vsyncadd [#allocation6], 0
      %s50 = sshll.u32 %s3, 4
      %s51 = int_to_ptr.hbm [resolvable:$true] %s50
      %s52 = sshll.u32 [#allocation7], 4
      %s53 = int_to_ptr.vmem [resolvable:$true] %s52
      %58 = dma.hbm_to_vmem [thread:$0]  %s51, 2048, %s53, [#allocation6], 128, 128, 8
    $region17: #{tpu_custom_call.1} parent=1 // pred_fallthru
      _
    // Predicated region
    $region18: #{tpu_custom_call.1} parent=1 // pred_check
      _
    $region19: #{tpu_custom_call.1} parent=1 // pred_check_branch
      %60 = sbr.rel (0) target = $region21
    $region20: #{tpu_custom_call.1} parent=1 // pred_region
      _
    $region21: #{tpu_custom_call.1} parent=1 // pred_fallthru
      _
    // Predicated region
    $region22: #{tpu_custom_call.1} parent=1 // pred_check
      _
    $region23: #{tpu_custom_call.1} parent=1 // pred_check_branch
      %62 = sbr.rel (0) target = $region25
    $region24: #{tpu_custom_call.1} parent=1 // pred_region
      %64 = vsyncadd [#allocation9], 0
      %s65 = sshll.u32 %s5, 4
      %s66 = int_to_ptr.hbm [resolvable:$true] %s65
      %s67 = sshll.u32 [#allocation8], 4
      %s68 = int_to_ptr.vmem [resolvable:$true] %s67
      %73 = dma.hbm_to_vmem [thread:$0]  %s66, 2048, %s68, [#allocation9], 128, 128, 8
    $region25: #{tpu_custom_call.1} parent=1 // pred_fallthru
      _
    // Predicated region
    $region26: #{tpu_custom_call.1} parent=1 // pred_check
      _
    $region27: #{tpu_custom_call.1} parent=1 // pred_check_branch
      %75 = sbr.rel (0) target = $region29
    $region28: #{tpu_custom_call.1} parent=1 // pred_region
      _
    $region29: #{tpu_custom_call.1} parent=1 // pred_fallthru
      _
    // Predicated region
    $region30: #{tpu_custom_call.1} parent=1 // pred_check
      _
    $region31: #{tpu_custom_call.1} parent=1 // pred_check_branch
      %77 = sbr.rel (0) target = $region33
    $region32: #{tpu_custom_call.1} parent=1 // pred_region
      %79 = vsyncadd [#allocation9], 0
      %s80 = sshll.u32 %s7, 4
      %s81 = int_to_ptr.hbm [resolvable:$true] %s80
      %s82 = sshll.u32 [#allocation10], 4
      %s83 = int_to_ptr.vmem [resolvable:$true] %s82
      %88 = dma.hbm_to_vmem [thread:$0]  %s81, 2048, %s83, [#allocation9], 128, 128, 8
    $region33: #{tpu_custom_call.1} parent=1 // pred_fallthru
      _
    // Predicated region
    $region34: #{tpu_custom_call.1} parent=1 // pred_check
      _
    $region35: #{tpu_custom_call.1} parent=1 // pred_check_branch
      %90 = sbr.rel (0) target = $region37
    $region36: #{tpu_custom_call.1} parent=1 // pred_region
      _
    $region37: #{tpu_custom_call.1} parent=1 // pred_fallthru
      _
    // Predicated region
    $region38: #{tpu_custom_call.1} parent=1 // pred_check
      _
    $region39: #{tpu_custom_call.1} parent=1 // pred_check_branch
      %92 = sbr.rel (0) target = $region41
    $region40: #{tpu_custom_call.1} parent=1 // pred_region
      _
    $region41: #{tpu_custom_call.1} parent=1 // pred_fallthru
      _
    // Predicated region
    $region42: #{tpu_custom_call.1} parent=1 // pred_check
      _
    $region43: #{tpu_custom_call.1} parent=1 // pred_check_branch
      %94 = sbr.rel (0) target = $region45
    $region44: #{tpu_custom_call.1} parent=1 // pred_region
      _
    $region45: #{tpu_custom_call.1} parent=1 // pred_fallthru
      _
    // Predicated region
    $region46: #{tpu_custom_call.1} parent=1 // pred_check
      _
    $region47: #{tpu_custom_call.1} parent=1 // pred_check_branch
      %96 = sbr.rel (0) target = $region49
    $region48: #{tpu_custom_call.1} parent=1 // pred_region
      %98 = dma.done [#allocation3], 128
    $region49: #{tpu_custom_call.1} parent=1 // pred_fallthru
      _
    // Predicated region
    $region50: #{tpu_custom_call.1} parent=1 // pred_check
      _
    $region51: #{tpu_custom_call.1} parent=1 // pred_check_branch
      %100 = sbr.rel (0) target = $region53
    $region52: #{tpu_custom_call.1} parent=1 // pred_region
      %102 = dma.done [#allocation6], 256
    $region53: #{tpu_custom_call.1} parent=1 // pred_fallthru
      _
    // Predicated region
    $region54: #{tpu_custom_call.1} parent=1 // pred_check
      _
    $region55: #{tpu_custom_call.1} parent=1 // pred_check_branch
      %104 = sbr.rel (0) target = $region57
    $region56: #{tpu_custom_call.1} parent=1 // pred_region
      %106 = dma.done [#allocation6], 2048
    $region57: #{tpu_custom_call.1} parent=1 // pred_fallthru
      _
    // Predicated region
    $region58: #{tpu_custom_call.1} parent=1 // pred_check
      _
    $region59: #{tpu_custom_call.1} parent=1 // pred_check_branch
      %108 = sbr.rel (0) target = $region61
    $region60: #{tpu_custom_call.1} parent=1 // pred_region
      %110 = dma.done [#allocation9], 2048
    $region61: #{tpu_custom_call.1} parent=1 // pred_fallthru
      _
    // Predicated region
    $region62: #{tpu_custom_call.1} parent=1 // pred_check
      _
    $region63: #{tpu_custom_call.1} parent=1 // pred_check_branch
      %112 = sbr.rel (0) target = $region65
    $region64: #{tpu_custom_call.1} parent=1 // pred_region
      %114 = dma.done [#allocation9], 2048
    $region65: #{tpu_custom_call.1} parent=1 // pred_fallthru
      _
    %v115 = vld [vmem:[#allocation2] sm:$0xff]
    %v116 = vld [vmem:[#allocation5] sm:$0xff]
    %v117 = vld [vmem:[#allocation5 + $0x8] sm:$0xff]
    %v118 = vld [vmem:[%s2] sm:$0x1]
    %v120 = vperm.slane %v118, 0
    %vm122 = vcmask 130048
    %v124 = vsel %vm122, %v115, 0
    %126 = vmatpush.msra.mxu0 0.0
    %127 = vmatpush.msra.mxu0 0.0
    %128 = vmatpush.msra.mxu0 0.0
    %129 = vmatpush.msra.mxu0 0.0
    %130 = vmatpush.msra.mxu0 0.0
    %131 = vmatpush.msra.mxu0 0.0
    %132 = vmatpush.msra.mxu0 0.0
    %133 = vmatpush.msra.mxu0 0.0
    %134 = vmatpush.msra.mxu0 0.0
    %135 = vmatpush.msra.mxu0 0.0
    %136 = vmatpush.msra.mxu0 0.0
    %137 = vmatpush.msra.mxu0 0.0
    %138 = vmatpush.msra.mxu0 0.0
    %139 = vmatpush.msra.mxu0 0.0
    %140 = vmatpush.msra.mxu0 %v117
    %141 = vmatpush.msra.mxu0 %v116
    %142 = vmatmul.f32.gmra.mxu0 %v124
    %v143 = vpop.f32.mrf.mxu0
    %v144 = vadd.f32 %v120, %v143
    %145 = vdwg.mxu0
    %v146 = vmax.f32 %v144, 0.0
    %v147 = vld [vmem:[#allocation7] sm:$0xff]
    %v148 = vld [vmem:[#allocation7 + $0x8] sm:$0xff]
    %v149 = vld [vmem:[#allocation7 + $0x10] sm:$0xff]
    %v150 = vld [vmem:[#allocation7 + $0x18] sm:$0xff]
    %v151 = vld [vmem:[#allocation7 + $0x20] sm:$0xff]
    %v152 = vld [vmem:[#allocation7 + $0x28] sm:$0xff]
    %v153 = vld [vmem:[#allocation7 + $0x30] sm:$0xff]
    %v154 = vld [vmem:[#allocation7 + $0x38] sm:$0xff]
    %v155 = vld [vmem:[#allocation7 + $0x40] sm:$0xff]
    %v156 = vld [vmem:[#allocation7 + $0x48] sm:$0xff]
    %v157 = vld [vmem:[#allocation7 + $0x50] sm:$0xff]
    %v158 = vld [vmem:[#allocation7 + $0x58] sm:$0xff]
    %v159 = vld [vmem:[#allocation7 + $0x60] sm:$0xff]
    %v160 = vld [vmem:[#allocation7 + $0x68] sm:$0xff]
    %v161 = vld [vmem:[#allocation7 + $0x70] sm:$0xff]
    %v162 = vld [vmem:[#allocation7 + $0x78] sm:$0xff]
    %v163 = vld [vmem:[%s4] sm:$0x1]
    %v165 = vperm.slane %v163, 0
    %167 = vmatpush.msra.mxu0 %v162
    %168 = vmatpush.msra.mxu0 %v161
    %169 = vmatpush.msra.mxu0 %v160
    %170 = vmatpush.msra.mxu0 %v159
    %171 = vmatpush.msra.mxu0 %v158
    %172 = vmatpush.msra.mxu0 %v157
    %173 = vmatpush.msra.mxu0 %v156
    %174 = vmatpush.msra.mxu0 %v155
    %175 = vmatpush.msra.mxu0 %v154
    %176 = vmatpush.msra.mxu0 %v153
    %177 = vmatpush.msra.mxu0 %v152
    %178 = vmatpush.msra.mxu0 %v151
    %179 = vmatpush.msra.mxu0 %v150
    %180 = vmatpush.msra.mxu0 %v149
    %181 = vmatpush.msra.mxu0 %v148
    %182 = vmatpush.msra.mxu0 %v147
    %183 = vmatmul.f32.gmra.mxu0 %v146
    %v184 = vpop.f32.mrf.mxu0
    %v185 = vadd.f32 %v165, %v184
    %186 = vdwg.mxu0
    %v187 = vmax.f32 %v185, 0.0
    %v188 = vld [vmem:[#allocation8] sm:$0xff]
    %v189 = vld [vmem:[#allocation8 + $0x8] sm:$0xff]
    %v190 = vld [vmem:[#allocation8 + $0x10] sm:$0xff]
    %v191 = vld [vmem:[#allocation8 + $0x18] sm:$0xff]
    %v192 = vld [vmem:[#allocation8 + $0x20] sm:$0xff]
    %v193 = vld [vmem:[#allocation8 + $0x28] sm:$0xff]
    %v194 = vld [vmem:[#allocation8 + $0x30] sm:$0xff]
    %v195 = vld [vmem:[#allocation8 + $0x38] sm:$0xff]
    %v196 = vld [vmem:[#allocation8 + $0x40] sm:$0xff]
    %v197 = vld [vmem:[#allocation8 + $0x48] sm:$0xff]
    %v198 = vld [vmem:[#allocation8 + $0x50] sm:$0xff]
    %v199 = vld [vmem:[#allocation8 + $0x58] sm:$0xff]
    %v200 = vld [vmem:[#allocation8 + $0x60] sm:$0xff]
    %v201 = vld [vmem:[#allocation8 + $0x68] sm:$0xff]
    %v202 = vld [vmem:[#allocation8 + $0x70] sm:$0xff]
    %v203 = vld [vmem:[#allocation8 + $0x78] sm:$0xff]
    %v204 = vld [vmem:[%s6] sm:$0x1]
    %v206 = vperm.slane %v204, 0
    %208 = vmatpush.msra.mxu0 %v203
    %209 = vmatpush.msra.mxu0 %v202
    %210 = vmatpush.msra.mxu0 %v201
    %211 = vmatpush.msra.mxu0 %v200
    %212 = vmatpush.msra.mxu0 %v199
    %213 = vmatpush.msra.mxu0 %v198
    %214 = vmatpush.msra.mxu0 %v197
    %215 = vmatpush.msra.mxu0 %v196
    %216 = vmatpush.msra.mxu0 %v195
    %217 = vmatpush.msra.mxu0 %v194
    %218 = vmatpush.msra.mxu0 %v193
    %219 = vmatpush.msra.mxu0 %v192
    %220 = vmatpush.msra.mxu0 %v191
    %221 = vmatpush.msra.mxu0 %v190
    %222 = vmatpush.msra.mxu0 %v189
    %223 = vmatpush.msra.mxu0 %v188
    %224 = vmatmul.f32.gmra.mxu0 %v187
    %v225 = vpop.f32.mrf.mxu0
    %v226 = vadd.f32 %v206, %v225
    %227 = vdwg.mxu0
    %v228 = vmax.f32 %v226, 0.0
    %v229 = vld [vmem:[#allocation10] sm:$0xff]
    %v230 = vld [vmem:[#allocation10 + $0x8] sm:$0xff]
    %v231 = vld [vmem:[#allocation10 + $0x10] sm:$0xff]
    %v232 = vld [vmem:[#allocation10 + $0x18] sm:$0xff]
    %v233 = vld [vmem:[#allocation10 + $0x20] sm:$0xff]
    %v234 = vld [vmem:[#allocation10 + $0x28] sm:$0xff]
    %v235 = vld [vmem:[#allocation10 + $0x30] sm:$0xff]
    %v236 = vld [vmem:[#allocation10 + $0x38] sm:$0xff]
    %v237 = vld [vmem:[#allocation10 + $0x40] sm:$0xff]
    %v238 = vld [vmem:[#allocation10 + $0x48] sm:$0xff]
    %v239 = vld [vmem:[#allocation10 + $0x50] sm:$0xff]
    %v240 = vld [vmem:[#allocation10 + $0x58] sm:$0xff]
    %v241 = vld [vmem:[#allocation10 + $0x60] sm:$0xff]
    %v242 = vld [vmem:[#allocation10 + $0x68] sm:$0xff]
    %v243 = vld [vmem:[#allocation10 + $0x70] sm:$0xff]
    %v244 = vld [vmem:[#allocation10 + $0x78] sm:$0xff]
    %v245 = vld [vmem:[%s8] sm:$0x1]
    %v247 = vperm.slane %v245, 0
    %249 = vmatpush.msra.mxu0 %v244
    %250 = vmatpush.msra.mxu0 %v243
    %251 = vmatpush.msra.mxu0 %v242
    %252 = vmatpush.msra.mxu0 %v241
    %253 = vmatpush.msra.mxu0 %v240
    %254 = vmatpush.msra.mxu0 %v239
    %255 = vmatpush.msra.mxu0 %v238
    %256 = vmatpush.msra.mxu0 %v237
    %257 = vmatpush.msra.mxu0 %v236
    %258 = vmatpush.msra.mxu0 %v235
    %259 = vmatpush.msra.mxu0 %v234
    %260 = vmatpush.msra.mxu0 %v233
    %261 = vmatpush.msra.mxu0 %v232
    %262 = vmatpush.msra.mxu0 %v231
    %263 = vmatpush.msra.mxu0 %v230
    %264 = vmatpush.msra.mxu0 %v229
    %265 = vmatmul.f32.gmra.mxu0 %v228
    %v266 = vpop.f32.mrf.mxu0
    %v267 = vadd.f32 %v247, %v266
    %268 = vdwg.mxu0
    %v269 = vtanh.pop %v267
    %v270 = vld [vmem:[%s9] sm:$0x1]
    %v272 = vperm.slane %v270, 0
    %v274 = vmul.f32 %v269, %v272
    %v275 = vld [vmem:[%s10] sm:$0x1]
    %v277 = vperm.slane %v275, 0
    %v279 = vadd.f32 %v274, %v277
    %280 = vst [vmem:[#allocation11] sm:$0xff] %v279
    // Predicated region
    $region66: #{tpu_custom_call.1} parent=1 // pred_check
      _
    $region67: #{tpu_custom_call.1} parent=1 // pred_check_branch
      %282 = sbr.rel (0) target = $region69
    $region68: #{tpu_custom_call.1} parent=1 // pred_region
      %284 = vsyncadd [#allocation4], 0
      %s286 = sshll.u32 [#allocation11], 4
      %s287 = int_to_ptr.vmem [resolvable:$true] %s286
      %s288 = sshll.u32 %s11, 4
      %s289 = int_to_ptr.hbm [resolvable:$true] %s288
      %291 = dma.vmem_to_hbm [thread:$0]  %s287, 128, %s289, [#allocation4]
    $region69: #{tpu_custom_call.1} parent=1 // pred_fallthru
      _
    // Predicated region
    $region70: #{tpu_custom_call.1} parent=1 // pred_check
      _
    $region71: #{tpu_custom_call.1} parent=1 // pred_check_branch
      %293 = sbr.rel (0) target = $region73
    $region72: #{tpu_custom_call.1} parent=1 // pred_region
      %295 = dma.done [#allocation4], 128
    $region73: #{tpu_custom_call.1} parent=1 // pred_fallthru
      _
    %296 = vsyncpa [#allocation3], 1
    %297 = vsyncpa [#allocation6], 1
    %298 = vsyncpa [#allocation9], 1
    %299 = vsyncpa [#allocation4], 1

</llo_original>
